<compile_context>
chip_gen: v5e
topology: v5e:2x2
jax: 0.10.0
libtpu: 0.0.40
codegen_flags: <defaults>
</compile_context>

<pallas_src>
import jax
import jax.numpy as jnp
from jax.experimental import pallas as pl
from jax.experimental.pallas import tpu as pltpu


_VMEM_LIMIT_BYTES = 48 * 1024 * 1024    # safe on v7x (64 MiB phys) and v5e/v6e (128 MiB)
_TILE_BUDGET_BYTES = 32 * 1024 * 1024   # budget for 2 in + 2 out double-buffered x tiles


# ---------------------------------------------------------------------------
# Fused path: one grid step handles TB whole batches (mean + MLP + scale).
# ---------------------------------------------------------------------------
def _se_fused_kernel(x_ref, w1_ref, b1_ref, w2_ref, b2_ref, o_ref):
    x = x_ref[...]                                            # (TB, C, L)
    inv_l = 1.0 / x.shape[-1]
    # squeeze: mean over the length (lane) dim, accumulated in f32
    m = jnp.sum(x.astype(jnp.float32), axis=-1) * inv_l       # (TB, C)
    # excite: Conv1d(C->R, k=1) + ReLU. Tiny-M matmul; the kernel is HBM-streaming
    # bound, so the MXU fill here is irrelevant and we just accept the small dot.
    h = jnp.dot(m, w1_ref[...], preferred_element_type=jnp.float32) + b1_ref[...]
    h = jnp.maximum(h, 0.0)
    # Conv1d(R->C, k=1) + Sigmoid
    s = jnp.dot(h, w2_ref[...], preferred_element_type=jnp.float32) + b2_ref[...]
    s = jax.nn.sigmoid(s)                                     # (TB, C)
    # scale: broadcast the per-(batch, channel) gate across L (lane broadcast)
    o_ref[...] = (x * s[:, :, None].astype(x.dtype)).astype(o_ref.dtype)


def _choose_tb(B, C, L, itemsize):
    """Largest divisor of B that fits the VMEM tile budget and leaves >= 2 grid steps."""
    per_batch_bytes = 4 * C * L * itemsize            # 2 input + 2 output double buffers
    max_tb = max(1, _TILE_BUDGET_BYTES // max(1, per_batch_bytes))
    if B >= 2:
        max_tb = min(max_tb, max(1, B // 2))          # keep both v7x TensorCores busy
    tb = 1
    for d in range(1, min(B, max_tb) + 1):
        if B % d == 0:
            tb = d
    return tb


def _se_fused(x, w1_t, b1_2d, w2_t, b2_2d, tb):
    B, C, L = x.shape
    R = w1_t.shape[1]
    return pl.pallas_call(
        _se_fused_kernel,
        out_shape=jax.ShapeDtypeStruct((B, C, L), x.dtype),
        grid_spec=pltpu.PrefetchScalarGridSpec(
            num_scalar_prefetch=0,
            grid=(B // tb,),
            in_specs=[
                pl.BlockSpec((tb, C, L), lambda b: (b, 0, 0)),   # x, TB batches / step
                pl.BlockSpec((C, R), lambda b: (0, 0)),          # w1^T (VMEM resident)
                pl.BlockSpec((1, R), lambda b: (0, 0)),          # b1
                pl.BlockSpec((R, C), lambda b: (0, 0)),          # w2^T (VMEM resident)
                pl.BlockSpec((1, C), lambda b: (0, 0)),          # b2
            ],
            out_specs=pl.BlockSpec((tb, C, L), lambda b: (b, 0, 0)),
        ),
        compiler_params=pltpu.CompilerParams(
            dimension_semantics=("parallel",),
            vmem_limit_bytes=_VMEM_LIMIT_BYTES,
        ),
    )(x, w1_t, b1_2d, w2_t, b2_2d)


# ---------------------------------------------------------------------------
# Two-pass fallback for very large C*L slabs (e.g. v7x 64 MiB VMEM):
#   pass 1: tiny (B, C) gate in plain XLA; pass 2: streaming x*s Pallas kernel.
# ---------------------------------------------------------------------------
def _scale_kernel(x_ref, s_ref, o_ref):
    o_ref[...] = (x_ref[...] * s_ref[...]).astype(o_ref.dtype)


def _choose_tl(C, L, itemsize):
    max_tl = max(128, _TILE_BUDGET_BYTES // max(1, 4 * C * itemsize))
    if L <= max_tl:
        return L
    tl = None
    for cand in range(128, max_tl + 1, 128):
        if L % cand == 0:
            tl = cand
    return tl if tl is not None else L


def _se_two_pass(x, w1_t, b1_2d, w2_t, b2_2d):
    B, C, L = x.shape
    # Pass 1 (tiny, O(B*C) work): squeeze + excite gate in plain XLA.
    m = jnp.mean(x.astype(jnp.float32), axis=-1)              # (B, C)
    h = jnp.maximum(m @ w1_t + b1_2d, 0.0)                    # (B, R)
    s = jax.nn.sigmoid(h @ w2_t + b2_2d).astype(x.dtype)      # (B, C)
    s3 = s[:, :, None]                                        # (B, C, 1)

    itemsize = jnp.dtype(x.dtype).itemsize
    tl = _choose_tl(C, L, itemsize)
    return pl.pallas_call(
        _scale_kernel,
        out_shape=jax.ShapeDtypeStruct((B, C, L), x.dtype),
        grid_spec=pltpu.PrefetchScalarGridSpec(
            num_scalar_prefetch=0,
            grid=(B, L // tl),
            in_specs=[
                pl.BlockSpec((1, C, tl), lambda b, l: (b, 0, l)),
                pl.BlockSpec((1, C, 1), lambda b, l: (b, 0, 0)),
            ],
            out_specs=pl.BlockSpec((1, C, tl), lambda b, l: (b, 0, l)),
        ),
        compiler_params=pltpu.CompilerParams(
            dimension_semantics=("parallel", "parallel"),
            vmem_limit_bytes=_VMEM_LIMIT_BYTES,
        ),
    )(x, s3)


# ---------------------------------------------------------------------------
# Public wrapper
# ---------------------------------------------------------------------------
def se_block_1d_conv(x, w1, b1, w2, b2, *, force_two_pass=False):
    """x: (B, C, L). w1: (R, C), b1: (R,) = Conv1d(C->R, k=1) params (kernel dim squeezed).
    w2: (C, R), b2: (C,) = Conv1d(R->C, k=1) params. Returns (B, C, L)."""
    B, C, L = x.shape
    R = w1.shape[0]
    w1_t = jnp.transpose(w1)            # (C, R)
    w2_t = jnp.transpose(w2)            # (R, C)
    b1_2d = b1.reshape(1, R)
    b2_2d = b2.reshape(1, C)
    itemsize = jnp.dtype(x.dtype).itemsize

    per_batch_bytes = 4 * C * L * itemsize
    if force_two_pass or per_batch_bytes > _TILE_BUDGET_BYTES:
        return _se_two_pass(x, w1_t, b1_2d, w2_t, b2_2d)

    tb = _choose_tb(B, C, L, itemsize)
    return _se_fused(x, w1_t, b1_2d, w2_t, b2_2d, tb)


def se_block_1d_conv_ref(x, w1, b1, w2, b2):
    # Pure-JAX reference matching the PyTorch module exactly.
    m = x.mean(axis=-1)                           # AdaptiveAvgPool1d(1) -> (B, C)
    h = jnp.maximum(m @ w1.T + b1, 0.0)           # Conv1d(C->R, k=1) + ReLU
    s = jax.nn.sigmoid(h @ w2.T + b2)             # Conv1d(R->C, k=1) + Sigmoid
    return x * s[:, :, None]


if __name__ == "__main__":
    # (B, C, L) Conv1d layout. L chosen as a multiple of 128 so output stores are
    # lane-dense; the kernel remains correct for any L (full-extent block on L).
    B, C, L = 2, 32, 128
    reduction_ratio = 0.25
    R = int(C * reduction_ratio)                  # 8

    key = jax.random.PRNGKey(0)
    kx, k1, k2, k3, k4 = jax.random.split(key, 5)

    x = jax.random.normal(kx, (B, C, L), dtype=jnp.float32)
    # Conv1d weights are (out, in, 1); kernel dim squeezed here.
    w1 = jax.random.normal(k1, (R, C), dtype=jnp.float32) * 0.1
    b1 = jax.random.normal(k2, (R,), dtype=jnp.float32) * 0.1
    w2 = jax.random.normal(k3, (C, R), dtype=jnp.float32) * 0.1
    b2 = jax.random.normal(k4, (C,), dtype=jnp.float32) * 0.1

    ref = se_block_1d_conv_ref(x, w1, b1, w2, b2)

    out = se_block_1d_conv(x, w1, b1, w2, b2)
    jax.block_until_ready(out)
    assert out.shape == (B, C, L)
    assert jnp.allclose(out, ref, atol=1e-5, rtol=1e-5), "fused kernel mismatch vs reference"

    # Also exercise the large-slab fallback (two-pass streaming x*s kernel).
    out2 = se_block_1d_conv(x, w1, b1, w2, b2, force_two_pass=True)
    jax.block_until_ready(out2)
    assert jnp.allclose(out2, ref, atol=1e-5, rtol=1e-5), "two-pass kernel mismatch vs reference"

    print("KERNEL_OK")
</pallas_src>

<mosaic_0001>
module attributes {stable_mosaic.version = 11 : i64} {
  func.func @_se_fused_kernel(%arg0: i32, %arg1: memref<1x32x128xf32, #tpu.memory_space<vmem>>, %arg2: memref<32x8xf32, #tpu.memory_space<vmem>>, %arg3: memref<1x8xf32, #tpu.memory_space<vmem>>, %arg4: memref<8x32xf32, #tpu.memory_space<vmem>>, %arg5: memref<1x32xf32, #tpu.memory_space<vmem>>, %arg6: memref<1x32x128xf32, #tpu.memory_space<vmem>>) attributes {dimension_semantics = [#tpu.dimension_semantics<parallel>], iteration_bounds = array<i64: 2>, scalar_prefetch = 0 : i64, scratch_operands = 0 : i64, tpu.core_type = #tpu.core_type<tc>, window_params = [{transform_indices = @transform_0, window_bounds = array<i64: 1, 32, 128>}, {pipeline_mode = #tpu.pipeline_mode<synchronous>, transform_indices = @transform_1, window_bounds = array<i64: 32, 8>}, {pipeline_mode = #tpu.pipeline_mode<synchronous>, transform_indices = @transform_2, window_bounds = array<i64: 1, 8>}, {pipeline_mode = #tpu.pipeline_mode<synchronous>, transform_indices = @transform_3, window_bounds = array<i64: 8, 32>}, {pipeline_mode = #tpu.pipeline_mode<synchronous>, transform_indices = @transform_4, window_bounds = array<i64: 1, 32>}, {transform_indices = @transform_5, window_bounds = array<i64: 1, 32, 128>}]} {
    %c0 = arith.constant 0 : index
    %c0_0 = arith.constant 0 : index
    %c0_1 = arith.constant 0 : index
    %0 = vector.load %arg1[%c0, %c0_0, %c0_1] : memref<1x32x128xf32, #tpu.memory_space<vmem>>, vector<1x32x128xf32>
    %cst = arith.constant dense<0.000000e+00> : vector<1x32xf32>
    %1 = vector.multi_reduction <add>, %0, %cst [2] : vector<1x32x128xf32> to vector<1x32xf32>
    %cst_2 = arith.constant 7.812500e-03 : f32
    %2 = vector.broadcast %cst_2 : f32 to vector<1x32xf32>
    %3 = arith.mulf %1, %2 : vector<1x32xf32>
    %c0_3 = arith.constant 0 : index
    %c0_4 = arith.constant 0 : index
    %4 = vector.load %arg2[%c0_3, %c0_4] : memref<32x8xf32, #tpu.memory_space<vmem>>, vector<32x8xf32>
    %cst_5 = arith.constant dense<0.000000e+00> : vector<1x8xf32>
    %5 = tpu.matmul %3, %4, %cst_5 {dimension_numbers = #tpu.dot_dimension_numbers<[1], [0], [0], [1], [0, 0, 1, 1], [], []>} : vector<1x32xf32>, vector<32x8xf32>, vector<1x8xf32> -> vector<1x8xf32>
    %c0_6 = arith.constant 0 : index
    %c0_7 = arith.constant 0 : index
    %6 = vector.load %arg3[%c0_6, %c0_7] : memref<1x8xf32, #tpu.memory_space<vmem>>, vector<1x8xf32>
    %7 = arith.addf %5, %6 : vector<1x8xf32>
    %cst_8 = arith.constant 0.000000e+00 : f32
    %8 = vector.broadcast %cst_8 : f32 to vector<1x8xf32>
    %9 = arith.maximumf %7, %8 : vector<1x8xf32>
    %c0_9 = arith.constant 0 : index
    %c0_10 = arith.constant 0 : index
    %10 = vector.load %arg4[%c0_9, %c0_10] : memref<8x32xf32, #tpu.memory_space<vmem>>, vector<8x32xf32>
    %cst_11 = arith.constant dense<0.000000e+00> : vector<1x32xf32>
    %11 = tpu.matmul %9, %10, %cst_11 {dimension_numbers = #tpu.dot_dimension_numbers<[1], [0], [0], [1], [0, 0, 1, 1], [], []>} : vector<1x8xf32>, vector<8x32xf32>, vector<1x32xf32> -> vector<1x32xf32>
    %c0_12 = arith.constant 0 : index
    %c0_13 = arith.constant 0 : index
    %12 = vector.load %arg5[%c0_12, %c0_13] : memref<1x32xf32, #tpu.memory_space<vmem>>, vector<1x32xf32>
    %13 = arith.addf %11, %12 : vector<1x32xf32>
    %14 = arith.negf %13 : vector<1x32xf32>
    %15 = math.exp %14 : vector<1x32xf32>
    %cst_14 = arith.constant 1.000000e+00 : f32
    %16 = vector.broadcast %cst_14 : f32 to vector<1x32xf32>
    %17 = arith.addf %16, %15 : vector<1x32xf32>
    %18 = arith.divf %16, %17 : vector<1x32xf32>
    %19 = vector.shape_cast %18 : vector<1x32xf32> to vector<1x32x1xf32>
    %20 = vector.broadcast %19 : vector<1x32x1xf32> to vector<1x32x128xf32>
    %21 = arith.mulf %0, %20 : vector<1x32x128xf32>
    %c0_15 = arith.constant 0 : index
    %c0_16 = arith.constant 0 : index
    %c0_17 = arith.constant 0 : index
    %22 = vector.load %arg6[%c0_15, %c0_16, %c0_17] : memref<1x32x128xf32, #tpu.memory_space<vmem>>, vector<1x32x128xf32>
    tpu.vector_store %arg6[%c0_15, %c0_16, %c0_17], %21 {strides = array<i32>} : memref<1x32x128xf32, #tpu.memory_space<vmem>>, vector<1x32x128xf32>,
    return
  }
  func.func @transform_0(%arg0: i32) -> (i32, i32, i32) {
    %c0_i32 = arith.constant 0 : i32
    %c0_i32_0 = arith.constant 0 : i32
    %c0_i32_1 = arith.constant 0 : i32
    return %arg0, %c0_i32, %c0_i32_0 : i32, i32, i32
  }
  func.func @transform_1(%arg0: i32) -> (i32, i32) {
    %c0_i32 = arith.constant 0 : i32
    %c0_i32_0 = arith.constant 0 : i32
    %c0_i32_1 = arith.constant 0 : i32
    return %c0_i32, %c0_i32_0 : i32, i32
  }
  func.func @transform_2(%arg0: i32) -> (i32, i32) {
    %c0_i32 = arith.constant 0 : i32
    %c0_i32_0 = arith.constant 0 : i32
    %c0_i32_1 = arith.constant 0 : i32
    return %c0_i32, %c0_i32_0 : i32, i32
  }
  func.func @transform_3(%arg0: i32) -> (i32, i32) {
    %c0_i32 = arith.constant 0 : i32
    %c0_i32_0 = arith.constant 0 : i32
    %c0_i32_1 = arith.constant 0 : i32
    return %c0_i32, %c0_i32_0 : i32, i32
  }
  func.func @transform_4(%arg0: i32) -> (i32, i32) {
    %c0_i32 = arith.constant 0 : i32
    %c0_i32_0 = arith.constant 0 : i32
    %c0_i32_1 = arith.constant 0 : i32
    return %c0_i32, %c0_i32_0 : i32, i32
  }
  func.func @transform_5(%arg0: i32) -> (i32, i32, i32) {
    %c0_i32 = arith.constant 0 : i32
    %c0_i32_0 = arith.constant 0 : i32
    %c0_i32_1 = arith.constant 0 : i32
    return %arg0, %c0_i32, %c0_i32_0 : i32, i32, i32
  }
}

</mosaic_0001>

<llo_original>
// kernel: tpu_custom_call.1
$region0: #{tpu_custom_call.1}
  #allocation0 [shape = 'u32[]', space=smem, size = 0x4, offset = 0x4, fixed_abs, tag = 'smem constant byte address 0x4 - core index']
  #allocation1 [shape = 'u32[72,128]{1,0:T(1,128)}', space=vmem, size = 0x9000, scoped, tag = 'internal scratch']
  %s0 = inlined_call_operand.hbm [shape: f32[2,32,128], index: 0, kind: input, shape index: {}]
  %s1 = inlined_call_operand.vmem [shape: f32[32,8], index: 1, kind: input, shape index: {}]
  %s2 = inlined_call_operand.vmem [shape: f32[1,8], index: 2, kind: input, shape index: {}]
  %s3 = inlined_call_operand.vmem [shape: f32[8,32], index: 3, kind: input, shape index: {}]
  %s4 = inlined_call_operand.vmem [shape: f32[1,32], index: 4, kind: input, shape index: {}]
  %s5 = inlined_call_operand.hbm [shape: f32[2,32,128], index: 5, kind: output, shape index: {}]
  %s6 = sld [smem:[#allocation0]]
  $region57: #{tpu_custom_call.1} parent=0
    _
  %s8 = ssub.s32 1, %s6
  %s9 = scalar_select 0, %s8, %s6
  $region1: #{tpu_custom_call.1} parent=0
    #allocation2 [shape = 'u8[32768]{0}', space=vmem, size = 0x8000, scoped, tag = 'input window, operand 0']
    #allocation3 [shape = 's32[2]{0}', space=sflag, size = 0x8, scoped, tag = 'scoped memory for tpu_custom_call.1']
    #allocation4 [shape = 's32[2]{0}', space=sflag, size = 0x8, scoped, tag = 'scoped memory for tpu_custom_call.1']
    #allocation5 [shape = 'u8[32768]{0}', space=vmem, size = 0x8000, scoped, tag = 'output window, operand 0']
    %10 = vsyncpa [#allocation3], 0
    %s11 = scalar_lea.sflag [#allocation3], 1
    %12 = vsyncpa %s11, 0
    %13 = vsyncpa [#allocation4], 0
    %s14 = scalar_lea.sflag [#allocation4], 1
    %15 = vsyncpa %s14, 0
    loop: start=0, step=1, limit=4
    $region2: #{tpu_custom_call.1} parent=1 // loop_pre_header
      _
    $region3: #{tpu_custom_call.1} parent=1 // loop_header
      %s17 = sphi 0, %s21
      %p18 = scmp.ge.s32.totalorder %s17, 4
      %s27 = sphi 0, %s29
      %s30 = sphi 0, %s27
      %s31 = sphi 0, %s30
      %s47 = sphi 0, %s31
      %s51 = sphi 0, %s51
      %s53 = sphi 0, %s51
      %s54 = sphi 0, %s53
      %s68 = sphi 0, %s54
      %s72 = sphi 0, %s72
      %s74 = sphi 0, %s72
      %s75 = sphi 0, %s74
      %s89 = sphi 0, %s75
      %s93 = sphi 0, %s93
      %s95 = sphi 0, %s93
      %s96 = sphi 0, %s95
      %s110 = sphi 0, %s96
      %s114 = sphi 0, %s114
      %s116 = sphi 0, %s114
      %s117 = sphi 0, %s116
      %s131 = sphi 0, %s117
      %s137 = sphi 0, %s139
      %s140 = sphi 0, %s137
      %s141 = sphi 0, %s140
      %s157 = sphi 0, %s141
    $region4: #{tpu_custom_call.1} parent=1 // loop_header_branch
      %20 = sbr.rel (%p18) target = $region8
    $region5: #{tpu_custom_call.1} parent=1 // loop_body
      %s22 = ssub.s32 %s17, 1
      %s23 = ssub.s32 %s17, 2
      %s24 = sadd.s32 %s17, 1
      %s25 = ssub.s32 %s17, %s24
      %p26 = scmp.eq.s32.totalorder %s25, 0
      %s28 = sadd.s32 %s27, 1
      %s29 = scalar_select %p26, %s27, %s28
      %p32 = pneg %p26
      %p33 = scmp.eq.s32.totalorder %s17, 1
      %p34 = por %p32, %p33
      %p35 = scmp.ne.s32.totalorder %s27, %s30
      %p36 = scmp.eq.s32.totalorder %s17, 0
      %p37 = por %p35, %p36
      %p38 = scmp.ne.s32.totalorder %s27, %s30
      %p39 = scmp.eq.s32.totalorder %s22, 1
      %p40 = por %p38, %p39
      %p41 = scmp.ne.s32.totalorder %s30, %s31
      %p42 = scmp.eq.s32.totalorder %s22, 0
      %p43 = por %p41, %p42
      %p44 = scmp.ne.s32.totalorder %s30, %s31
      %p45 = scmp.eq.s32.totalorder %s23, 1
      %p46 = por %p44, %p45
      %p48 = scmp.ne.s32.totalorder %s31, %s47
      %p49 = scmp.eq.s32.totalorder %s23, 0
      %p50 = por %p48, %p49
      %s52 = sadd.s32 %s51, 1
      %p55 = scmp.eq.s32.totalorder %s17, 1
      %p56 = scmp.ne.s32.totalorder %s51, %s53
      %p57 = scmp.eq.s32.totalorder %s17, 0
      %p58 = por %p56, %p57
      %p59 = scmp.ne.s32.totalorder %s51, %s53
      %p60 = scmp.eq.s32.totalorder %s22, 1
      %p61 = por %p59, %p60
      %p62 = scmp.ne.s32.totalorder %s53, %s54
      %p63 = scmp.eq.s32.totalorder %s22, 0
      %p64 = por %p62, %p63
      %p65 = scmp.ne.s32.totalorder %s53, %s54
      %p66 = scmp.eq.s32.totalorder %s23, 1
      %p67 = por %p65, %p66
      %p69 = scmp.ne.s32.totalorder %s54, %s68
      %p70 = scmp.eq.s32.totalorder %s23, 0
      %p71 = por %p69, %p70
      %s73 = sadd.s32 %s72, 1
      %p76 = scmp.eq.s32.totalorder %s17, 1
      %p77 = scmp.ne.s32.totalorder %s72, %s74
      %p78 = scmp.eq.s32.totalorder %s17, 0
      %p79 = por %p77, %p78
      %p80 = scmp.ne.s32.totalorder %s72, %s74
      %p81 = scmp.eq.s32.totalorder %s22, 1
      %p82 = por %p80, %p81
      %p83 = scmp.ne.s32.totalorder %s74, %s75
      %p84 = scmp.eq.s32.totalorder %s22, 0
      %p85 = por %p83, %p84
      %p86 = scmp.ne.s32.totalorder %s74, %s75
      %p87 = scmp.eq.s32.totalorder %s23, 1
      %p88 = por %p86, %p87
      %p90 = scmp.ne.s32.totalorder %s75, %s89
      %p91 = scmp.eq.s32.totalorder %s23, 0
      %p92 = por %p90, %p91
      %s94 = sadd.s32 %s93, 1
      %p97 = scmp.eq.s32.totalorder %s17, 1
      %p98 = scmp.ne.s32.totalorder %s93, %s95
      %p99 = scmp.eq.s32.totalorder %s17, 0
      %p100 = por %p98, %p99
      %p101 = scmp.ne.s32.totalorder %s93, %s95
      %p102 = scmp.eq.s32.totalorder %s22, 1
      %p103 = por %p101, %p102
      %p104 = scmp.ne.s32.totalorder %s95, %s96
      %p105 = scmp.eq.s32.totalorder %s22, 0
      %p106 = por %p104, %p105
      %p107 = scmp.ne.s32.totalorder %s95, %s96
      %p108 = scmp.eq.s32.totalorder %s23, 1
      %p109 = por %p107, %p108
      %p111 = scmp.ne.s32.totalorder %s96, %s110
      %p112 = scmp.eq.s32.totalorder %s23, 0
      %p113 = por %p111, %p112
      %s115 = sadd.s32 %s114, 1
      %p118 = scmp.eq.s32.totalorder %s17, 1
      %p119 = scmp.ne.s32.totalorder %s114, %s116
      %p120 = scmp.eq.s32.totalorder %s17, 0
      %p121 = por %p119, %p120
      %p122 = scmp.ne.s32.totalorder %s114, %s116
      %p123 = scmp.eq.s32.totalorder %s22, 1
      %p124 = por %p122, %p123
      %p125 = scmp.ne.s32.totalorder %s116, %s117
      %p126 = scmp.eq.s32.totalorder %s22, 0
      %p127 = por %p125, %p126
      %p128 = scmp.ne.s32.totalorder %s116, %s117
      %p129 = scmp.eq.s32.totalorder %s23, 1
      %p130 = por %p128, %p129
      %p132 = scmp.ne.s32.totalorder %s117, %s131
      %p133 = scmp.eq.s32.totalorder %s23, 0
      %p134 = por %p132, %p133
      %s135 = ssub.s32 %s17, %s24
      %p136 = scmp.eq.s32.totalorder %s135, 0
      %s138 = sadd.s32 %s137, 1
      %s139 = scalar_select %p136, %s137, %s138
      %p142 = pneg %p136
      %p143 = scmp.eq.s32.totalorder %s17, 1
      %p144 = por %p142, %p143
      %p145 = scmp.ne.s32.totalorder %s137, %s140
      %p146 = scmp.eq.s32.totalorder %s17, 0
      %p147 = por %p145, %p146
      %p148 = scmp.ne.s32.totalorder %s137, %s140
      %p149 = scmp.eq.s32.totalorder %s22, 1
      %p150 = por %p148, %p149
      %p151 = scmp.ne.s32.totalorder %s140, %s141
      %p152 = scmp.eq.s32.totalorder %s22, 0
      %p153 = por %p151, %p152
      %p154 = scmp.ne.s32.totalorder %s140, %s141
      %p155 = scmp.eq.s32.totalorder %s23, 1
      %p156 = por %p154, %p155
      %p158 = scmp.ne.s32.totalorder %s141, %s157
      %p159 = scmp.eq.s32.totalorder %s23, 0
      %p160 = por %p158, %p159
      %p161 = scmp.le.s32.totalorder 1, %s17
      %p162 = scmp.lt.s32.totalorder %s17, 3
      %p163 = pnand %p161, %p162
      %p164 = pneg %p163
      // Predicated region
      $region9: #{tpu_custom_call.1} parent=5 // pred_check
        _
      $region10: #{tpu_custom_call.1} parent=5 // pred_check_branch
        %166 = sbr.rel (%p163) target = $region12
      $region11: #{tpu_custom_call.1} parent=5 // pred_region
        %s167 = ssub.s32 %s17, 1
        // Predicated region
        $region13: #{tpu_custom_call.1} parent=11 // pred_check
          %p168 = pneg %p64
        $region14: #{tpu_custom_call.1} parent=11 // pred_check_branch
          %170 = sbr.rel (%p168) target = $region16
        $region15: #{tpu_custom_call.1} parent=11 // pred_region
          _
        $region16: #{tpu_custom_call.1} parent=11 // pred_fallthru
          _
        // Predicated region
        $region17: #{tpu_custom_call.1} parent=11 // pred_check
          %p171 = pneg %p85
        $region18: #{tpu_custom_call.1} parent=11 // pred_check_branch
          %173 = sbr.rel (%p171) target = $region20
        $region19: #{tpu_custom_call.1} parent=11 // pred_region
          _
        $region20: #{tpu_custom_call.1} parent=11 // pred_fallthru
          _
        // Predicated region
        $region21: #{tpu_custom_call.1} parent=11 // pred_check
          %p174 = pneg %p106
        $region22: #{tpu_custom_call.1} parent=11 // pred_check_branch
          %176 = sbr.rel (%p174) target = $region24
        $region23: #{tpu_custom_call.1} parent=11 // pred_region
          _
        $region24: #{tpu_custom_call.1} parent=11 // pred_fallthru
          _
        // Predicated region
        $region25: #{tpu_custom_call.1} parent=11 // pred_check
          %p177 = pneg %p127
        $region26: #{tpu_custom_call.1} parent=11 // pred_check_branch
          %179 = sbr.rel (%p177) target = $region28
        $region27: #{tpu_custom_call.1} parent=11 // pred_region
          _
        $region28: #{tpu_custom_call.1} parent=11 // pred_fallthru
          _
      $region12: #{tpu_custom_call.1} parent=5 // pred_fallthru
        _
      %p180 = scmp.lt.s32.totalorder %s17, 2
      // Predicated region
      $region29: #{tpu_custom_call.1} parent=5 // pred_check
        %p181 = pneg %p180
      $region30: #{tpu_custom_call.1} parent=5 // pred_check_branch
        %183 = sbr.rel (%p181) target = $region32
      $region31: #{tpu_custom_call.1} parent=5 // pred_region
        // Predicated region
        $region33: #{tpu_custom_call.1} parent=31 // pred_check
          %p184 = pneg %p37
        $region34: #{tpu_custom_call.1} parent=31 // pred_check_branch
          %186 = sbr.rel (%p184) target = $region36
        $region35: #{tpu_custom_call.1} parent=31 // pred_region
          %s187 = sand.u32 %s27, 1
          %s188 = scalar_lea.sflag [#allocation3], %s187
          %s189 = sand.u32 %s27, 1
          %s190 = smul.addr %s189, 32
          %s191 = scalar_lea.vmem [#allocation2], %s190
          %193 = vsyncadd %s188, 0
          %s194 = smul.addr %s17, 4
          %s195 = smul.addr %s194, 8
          %s196 = scalar_lea.hbm %s0, %s195
          %s197 = sshll.u32 %s196, 4
          %s198 = int_to_ptr.hbm [resolvable:$true] %s197
          %s199 = sshll.u32 %s191, 4
          %s200 = int_to_ptr.vmem [resolvable:$true] %s199
          %205 = dma.hbm_to_vmem [thread:$0]  %s198, 512, %s200, %s188, 128, 128, 8
        $region36: #{tpu_custom_call.1} parent=31 // pred_fallthru
          _
      $region32: #{tpu_custom_call.1} parent=5 // pred_fallthru
        _
      %p206 = scmp.le.s32.totalorder 1, %s17
      %p207 = scmp.lt.s32.totalorder %s17, 3
      %p208 = pnand %p206, %p207
      %p209 = pneg %p208
      // Predicated region
      $region37: #{tpu_custom_call.1} parent=5 // pred_check
        _
      $region38: #{tpu_custom_call.1} parent=5 // pred_check_branch
        %211 = sbr.rel (%p208) target = $region40
      $region39: #{tpu_custom_call.1} parent=5 // pred_region
        %s212 = ssub.s32 %s17, 1
        %s213 = sand.u32 %s30, 1
        %s214 = scalar_lea.sflag [#allocation3], %s213
        %s215 = sand.u32 %s30, 1
        %s216 = smul.addr %s215, 32
        %s217 = scalar_lea.vmem [#allocation2], %s216
        // Predicated region
        $region41: #{tpu_custom_call.1} parent=39 // pred_check
          %p218 = pneg %p43
        $region42: #{tpu_custom_call.1} parent=39 // pred_check_branch
          %220 = sbr.rel (%p218) target = $region44
        $region43: #{tpu_custom_call.1} parent=39 // pred_region
          %222 = dma.done %s214, 512
        $region44: #{tpu_custom_call.1} parent=39 // pred_fallthru
          _
        %s223 = sand.u32 %s30, 1
        %s224 = scalar_lea.sflag [#allocation3], %s223
        %s225 = sand.u32 %s30, 1
        %s226 = smul.addr %s225, 32
        %s227 = scalar_lea.vmem [#allocation2], %s226
        %p228 = pneg %p43
        %p229 = pneg %p40
        %p230 = pneg %p64
        %p231 = pneg %p61
        %p232 = pneg %p85
        %p233 = pneg %p82
        %p234 = pneg %p106
        %p235 = pneg %p103
        %p236 = pneg %p127
        %p237 = pneg %p124
        %p238 = pneg %p153
        %p239 = pneg %p150
        %s240 = sand.u32 %s140, 1
        %s241 = scalar_lea.sflag [#allocation4], %s240
        %s242 = sand.u32 %s140, 1
        %s243 = smul.addr %s242, 32
        %s244 = scalar_lea.vmem [#allocation5], %s243
        %v245 = vld [vmem:[%s217] sm:$0xff]
        %v246 = vld [vmem:[%s217 + $0x8] sm:$0xff]
        %v247 = vld [vmem:[%s217 + $0x10] sm:$0xff]
        %v248 = vld [vmem:[%s217 + $0x18] sm:$0xff]
        %249 = vadd.xlane.f32.xlu0 %v245
        %v250 = vpop.xlane.xlu0 %249
        %251 = vadd.xlane.f32.xlu0 %v246
        %v252 = vpop.xlane.xlu0 %251
        %253 = vadd.xlane.f32.xlu0 %v247
        %v254 = vpop.xlane.xlu0 %253
        %255 = vadd.xlane.f32.xlu0 %v248
        %v256 = vpop.xlane.xlu0 %255
        %v257 = vmul.f32 %v250, 0.0078125
        %v258 = vmul.f32 %v252, 0.0078125
        %v259 = vmul.f32 %v254, 0.0078125
        %v260 = vmul.f32 %v256, 0.0078125
        %v261 = vld [vmem:[%s1] sm:$0xff]
        %v262 = vld [vmem:[%s1 + $0x8] sm:$0xff]
        %v263 = vld [vmem:[%s1 + $0x10] sm:$0xff]
        %v264 = vld [vmem:[%s1 + $0x18] sm:$0xff]
        %v265 = vld [vmem:[%s2] sm:$0x1]
        %v270 = vlaneseq
        %v271 = vand.u32 %v270, 127
        %v272 = vperm.slane %v257, %v271
        %v273 = vadd.s32 %v271, 4294967288
        %v274 = vperm.slane %v258, %v273
        %vm275 = vcmask 130112
        %v276 = vsel %vm275, %v274, %v272
        %v277 = vadd.s32 %v271, 4294967280
        %v278 = vperm.slane %v259, %v277
        %vm279 = vcmask 195712
        %v280 = vsel %vm279, %v278, %v276
        %v281 = vadd.s32 %v271, 4294967272
        %v282 = vperm.slane %v260, %v281
        %vm283 = vcmask 261312
        %v284 = vsel %vm283, %v282, %v280
        %vm285 = vcmask 261120
        %v286 = vsel %vm285, %v284, 0
        %288 = vmatpush.msra.mxu0 0.0
        %289 = vmatpush.msra.mxu0 0.0
        %290 = vmatpush.msra.mxu0 0.0
        %291 = vmatpush.msra.mxu0 0.0
        %292 = vmatpush.msra.mxu0 0.0
        %293 = vmatpush.msra.mxu0 0.0
        %294 = vmatpush.msra.mxu0 0.0
        %295 = vmatpush.msra.mxu0 0.0
        %296 = vmatpush.msra.mxu0 0.0
        %297 = vmatpush.msra.mxu0 0.0
        %298 = vmatpush.msra.mxu0 0.0
        %299 = vmatpush.msra.mxu0 0.0
        %300 = vmatpush.msra.mxu0 %v264
        %301 = vmatpush.msra.mxu0 %v263
        %302 = vmatpush.msra.mxu0 %v262
        %303 = vmatpush.msra.mxu0 %v261
        %304 = vmatmul.f32.gmra.mxu0 %v286
        %v305 = vpop.f32.mrf.mxu0
        %v306 = vadd.f32 %v265, %v305
        %307 = vdwg.mxu0
        %v308 = vmax.f32 %v306, 0.0
        %v309 = vld [vmem:[%s3] sm:$0xff]
        %v310 = vld [vmem:[%s4] sm:$0x1]
        %vm311 = vcmask 64512
        %v313 = vsel %vm311, %v308, 0
        %315 = vmatpush.msra.mxu0 0.0
        %316 = vmatpush.msra.mxu0 0.0
        %317 = vmatpush.msra.mxu0 0.0
        %318 = vmatpush.msra.mxu0 0.0
        %319 = vmatpush.msra.mxu0 0.0
        %320 = vmatpush.msra.mxu0 0.0
        %321 = vmatpush.msra.mxu0 0.0
        %322 = vmatpush.msra.mxu0 0.0
        %323 = vmatpush.msra.mxu0 0.0
        %324 = vmatpush.msra.mxu0 0.0
        %325 = vmatpush.msra.mxu0 0.0
        %326 = vmatpush.msra.mxu0 0.0
        %327 = vmatpush.msra.mxu0 0.0
        %328 = vmatpush.msra.mxu0 0.0
        %329 = vmatpush.msra.mxu0 0.0
        %330 = vmatpush.msra.mxu0 %v309
        %331 = vmatmul.f32.gmra.mxu0 %v313
        %v332 = vpop.f32.mrf.mxu0
        %v333 = vadd.f32 %v310, %v332
        %334 = vdwg.mxu0
        %v335 = vxor.u32 %v333, 2147483648
        %v336 = vmul.f32 %v335, 1.442695
        %v337 = vpow.pop %v336
        %v338 = vadd.f32 %v337, 1.0
        %v339 = vrcp.pop %v338
        %v340 = vmul.f32 %v338, %v339
        %v341 = vsub.f32 1.0, %v340
        %v342 = vmul.f32 %v339, %v341
        %v343 = vadd.f32 %v339, %v342
        %vm344 = vweird.f32 %v338
        %vm345 = vweird.f32 %v339
        %vm346 = vmor %vm344, %vm345
        %v347 = vsel %vm346, %v339, %v343
        %v348 = vand.u32 2147483647, %v338
        %vm349 = vcmp.eq.f32.partialorder %v348, 8.507059e+37
        %v350 = vand.u32 %v338, 2147483648
        %v351 = vor.u32 1.1754944e-38, %v350
        %v352 = vsel %vm349, %v351, %v347
        %v353 = vmul.f32 1.0, %v352
        %v354 = vperm.slane %v353, 0
        %v355 = vlaneseq
        %v356 = vshrl.u32 %v355, 7
        %358 = vset.pattern.permute.xlu0 %v356
        %359 = vperm.xlu0 %358, %v354
        %v360 = vpop.permute.xlu0 %359
        %v361 = vlaneseq
        %v362 = vshrl.u32 %v361, 7
        %v363 = vadd.s32 %v362, 8
        %364 = vset.pattern.permute.xlu0 %v363
        %365 = vperm.xlu0 %364, %v354
        %v366 = vpop.permute.xlu0 %365
        %v367 = vlaneseq
        %v368 = vshrl.u32 %v367, 7
        %v369 = vadd.s32 %v368, 16
        %370 = vset.pattern.permute.xlu0 %v369
        %371 = vperm.xlu0 %370, %v354
        %v372 = vpop.permute.xlu0 %371
        %v373 = vlaneseq
        %v374 = vshrl.u32 %v373, 7
        %v375 = vadd.s32 %v374, 24
        %376 = vset.pattern.permute.xlu0 %v375
        %377 = vperm.xlu0 %376, %v354
        %v378 = vpop.permute.xlu0 %377
        %v379 = vmul.f32 %v245, %v360
        %v380 = vmul.f32 %v246, %v366
        %v381 = vmul.f32 %v247, %v372
        %v382 = vmul.f32 %v248, %v378
        %383 = vst [vmem:[%s244] sm:$0xff] %v379
        %384 = vst [vmem:[%s244 + $0x8] sm:$0xff] %v380
        %385 = vst [vmem:[%s244 + $0x10] sm:$0xff] %v381
        %386 = vst [vmem:[%s244 + $0x18] sm:$0xff] %v382
        %s387 = sand.u32 %s140, 1
        %s388 = scalar_lea.sflag [#allocation4], %s387
        %s389 = sand.u32 %s140, 1
        %s390 = smul.addr %s389, 32
        %s391 = scalar_lea.vmem [#allocation5], %s390
        // Predicated region
        $region45: #{tpu_custom_call.1} parent=39 // pred_check
          %p392 = pneg %p150
        $region46: #{tpu_custom_call.1} parent=39 // pred_check_branch
          %394 = sbr.rel (%p392) target = $region48
        $region47: #{tpu_custom_call.1} parent=39 // pred_region
          %396 = vsyncadd %s388, 0
          %s397 = smul.addr %s22, 4
          %s398 = smul.addr %s397, 8
          %s399 = scalar_lea.hbm %s5, %s398
          %s400 = sshll.u32 %s391, 4
          %s401 = int_to_ptr.vmem [resolvable:$true] %s400
          %s402 = sshll.u32 %s399, 4
          %s403 = int_to_ptr.hbm [resolvable:$true] %s402
          %408 = dma.vmem_to_hbm [thread:$0]  %s401, 512, %s403, %s388, 128, 128, 8
        $region48: #{tpu_custom_call.1} parent=39 // pred_fallthru
          _
      $region40: #{tpu_custom_call.1} parent=5 // pred_fallthru
        _
      %p409 = scmp.le.s32.totalorder 2, %s17
      // Predicated region
      $region49: #{tpu_custom_call.1} parent=5 // pred_check
        %p410 = pneg %p409
      $region50: #{tpu_custom_call.1} parent=5 // pred_check_branch
        %412 = sbr.rel (%p410) target = $region52
      $region51: #{tpu_custom_call.1} parent=5 // pred_region
        %s413 = ssub.s32 %s17, 2
        // Predicated region
        $region53: #{tpu_custom_call.1} parent=51 // pred_check
          %p414 = pneg %p156
        $region54: #{tpu_custom_call.1} parent=51 // pred_check_branch
          %416 = sbr.rel (%p414) target = $region56
        $region55: #{tpu_custom_call.1} parent=51 // pred_region
          %s417 = sand.u32 %s141, 1
          %s418 = scalar_lea.sflag [#allocation4], %s417
          %s419 = sand.u32 %s141, 1
          %s420 = smul.addr %s419, 32
          %s421 = scalar_lea.vmem [#allocation5], %s420
          %423 = dma.done %s418, 512
        $region56: #{tpu_custom_call.1} parent=51 // pred_fallthru
          _
      $region52: #{tpu_custom_call.1} parent=5 // pred_fallthru
        _
    $region6: #{tpu_custom_call.1} parent=1 // loop_footer
      %s21 = sadd.s32 1, %s17
    $region7: #{tpu_custom_call.1} parent=1 // loop_footer_branch
      %16 = sbr.rel target = $region3
    $region8: #{tpu_custom_call.1} parent=1 // loop_exit
      _
    %424 = vsyncpa [#allocation3], 1
    %s425 = scalar_lea.sflag [#allocation3], 1
    %426 = vsyncpa %s425, 1
    %427 = vsyncpa [#allocation4], 1
    %s428 = scalar_lea.sflag [#allocation4], 1
    %429 = vsyncpa %s428, 1

</llo_original>
